<compile_context>
chip_gen: v6e
topology: v6e:2x2x1
jax: 0.10.0
libtpu: 0.0.40
codegen_flags: <defaults>
</compile_context>

<pallas_src>
import math
import functools

import jax
import jax.numpy as jnp
from jax import lax
from jax.experimental import pallas as pl
from jax.experimental.pallas import tpu as pltpu


# ----------------------------------------------------------------------------
# small helpers
# ----------------------------------------------------------------------------
def _round_up(x, m):
    return (x + m - 1) // m * m


def _pad_to(x, axis, mult):
    size = x.shape[axis]
    pad = (-size) % mult
    if pad == 0:
        return x
    widths = [(0, 0)] * x.ndim
    widths[axis] = (0, pad)
    return jnp.pad(x, widths)


def _pick_tile(size, preferred):
    """Largest preferred tile that divides `size`; otherwise full size (if
    small) or the smallest preferred tile (with padding as a fallback)."""
    for t in preferred:
        if size >= t and size % t == 0:
            return t
    if size < preferred[-1]:
        return size
    return preferred[-1]


# ----------------------------------------------------------------------------
# Kernel 1: tiled matmul  y = x @ w + b  [+ReLU]
#   x: (M, K) bf16, w: (K, N) bf16, b: (N,) f32 -> (M, N) out_dtype
#   f32 VMEM accumulator, grid (M, N, K), K marked "arbitrary".
# ----------------------------------------------------------------------------
def _matmul_kernel(x_ref, w_ref, b_ref, o_ref, acc_ref, *, relu):
    @pl.when(pl.program_id(2) == 0)
    def _init():
        acc_ref[...] = jnp.zeros_like(acc_ref)

    acc_ref[...] += jnp.dot(x_ref[...], w_ref[...],
                            preferred_element_type=jnp.float32)

    @pl.when(pl.program_id(2) == pl.num_programs(2) - 1)
    def _fin():
        y = acc_ref[...] + b_ref[...]
        if relu:
            y = jnp.maximum(y, 0.0)
        o_ref[...] = y.astype(o_ref.dtype)


def matmul(x, w, b, relu=False, out_dtype=jnp.bfloat16):
    M, K = x.shape
    N = w.shape[1]
    tm = _pick_tile(M, (512, 256, 128))
    tk = _pick_tile(K, (512, 256, 128))
    tn = _pick_tile(N, (256, 128))
    xp = _pad_to(_pad_to(x, 0, tm), 1, tk)
    wp = _pad_to(_pad_to(w, 0, tk), 1, tn)
    bp = _pad_to(b.reshape(1, N).astype(jnp.float32), 1, tn)
    Mp, Kp = xp.shape
    Np = wp.shape[1]
    out = pl.pallas_call(
        functools.partial(_matmul_kernel, relu=relu),
        grid=(Mp // tm, Np // tn, Kp // tk),
        out_shape=jax.ShapeDtypeStruct((Mp, Np), out_dtype),
        in_specs=[
            pl.BlockSpec((tm, tk), lambda i, j, k: (i, k)),
            pl.BlockSpec((tk, tn), lambda i, j, k: (k, j)),
            pl.BlockSpec((1, tn), lambda i, j, k: (0, j)),
        ],
        out_specs=pl.BlockSpec((tm, tn), lambda i, j, k: (i, j)),
        scratch_shapes=[pltpu.VMEM((tm, tn), jnp.float32)],
        compiler_params=pltpu.CompilerParams(
            dimension_semantics=("parallel", "parallel", "arbitrary")),
    )(xp, wp, bp)
    if (Mp, Np) != (M, N):
        out = out[:M, :N]
    return out


# ----------------------------------------------------------------------------
# Kernel 2: multi-head scaled-dot-product attention, one (batch, head) per
# grid step.  q/k/v: (B, head, T/S, D) bf16; optional key_bias (B, 1, S) f32
# (additive -1e30 pad mask).  Q is pre-scaled (scale folded into weights).
# ----------------------------------------------------------------------------
def _mha_kernel(*refs, causal, has_bias):
    if has_bias:
        q_ref, k_ref, v_ref, bias_ref, o_ref = refs
    else:
        q_ref, k_ref, v_ref, o_ref = refs
        bias_ref = None

    q = q_ref[0, 0]                               # (T, D) bf16
    k = k_ref[0, 0]                               # (S, D) bf16
    v = v_ref[0, 0]                               # (S, D) bf16
    T, D = q.shape
    S = k.shape[0]

    s = lax.dot_general(q, k, (((1,), (1,)), ((), ())),
                        preferred_element_type=jnp.float32)   # (T, S) f32
    if has_bias:
        s = s + bias_ref[0]                       # (1, S) pad bias, broadcast
    if causal:
        row = lax.broadcasted_iota(jnp.int32, (T, S), 0)
        col = lax.broadcasted_iota(jnp.int32, (T, S), 1)
        s = jnp.where(col > row, -1e30, s)

    m = jnp.max(s, axis=-1, keepdims=True)
    e = jnp.exp(s - m)
    denom = jnp.sum(e, axis=-1, keepdims=True)
    p = (e * pl.reciprocal(denom, approx=True)).astype(jnp.bfloat16)
    o = jnp.dot(p, v, preferred_element_type=jnp.float32)      # (T, D) f32
    o_ref[0, 0] = o.astype(o_ref.dtype)


def mha_attention(q, k, v, key_bias, *, head_num, causal):
    B, T, H = q.shape
    S = k.shape[1]
    D = H // head_num
    qh = q.reshape(B, T, head_num, D).transpose(0, 2, 1, 3)   # (B, nh, T, D)
    kh = k.reshape(B, S, head_num, D).transpose(0, 2, 1, 3)
    vh = v.reshape(B, S, head_num, D).transpose(0, 2, 1, 3)

    in_specs = [
        pl.BlockSpec((1, 1, T, D), lambda b, h: (b, h, 0, 0)),
        pl.BlockSpec((1, 1, S, D), lambda b, h: (b, h, 0, 0)),
        pl.BlockSpec((1, 1, S, D), lambda b, h: (b, h, 0, 0)),
    ]
    args = [qh, kh, vh]
    has_bias = key_bias is not None
    if has_bias:
        in_specs.append(pl.BlockSpec((1, 1, S), lambda b, h: (b, 0, 0)))
        args.append(key_bias)

    kernel = functools.partial(_mha_kernel, causal=causal, has_bias=has_bias)
    out = pl.pallas_call(
        kernel,
        grid=(B, head_num),
        out_shape=jax.ShapeDtypeStruct((B, head_num, T, D), jnp.bfloat16),
        in_specs=in_specs,
        out_specs=pl.BlockSpec((1, 1, T, D), lambda b, h: (b, h, 0, 0)),
        compiler_params=pltpu.CompilerParams(
            dimension_semantics=("parallel", "parallel")),
    )(*args)
    return out.transpose(0, 2, 1, 3).reshape(B, T, H)          # (B, T, H) bf16


# ----------------------------------------------------------------------------
# Kernel 3: fused output-projection + residual + LayerNorm (tiled over M)
#   out = LN(x @ w + b + res);  x/w/res bf16, b/gamma/beta f32, out bf16.
# ----------------------------------------------------------------------------
def _proj_ln_kernel(x_ref, w_ref, b_ref, r_ref, g_ref, beta_ref, o_ref, *, eps):
    y = jnp.dot(x_ref[...], w_ref[...], preferred_element_type=jnp.float32)
    y = y + b_ref[...] + r_ref[...].astype(jnp.float32)
    mean = jnp.mean(y, axis=-1, keepdims=True)
    var = jnp.mean(jnp.square(y - mean), axis=-1, keepdims=True)
    o_ref[...] = ((y - mean) * lax.rsqrt(var + eps) * g_ref[...]
                  + beta_ref[...]).astype(o_ref.dtype)


def proj_ln(x, w, b, res, gamma, beta, eps=1e-5):
    M, K = x.shape
    N = w.shape[1]
    tm = _pick_tile(M, (256, 128))
    xp = _pad_to(x, 0, tm)
    rp = _pad_to(res, 0, tm)
    Mp = xp.shape[0]
    out = pl.pallas_call(
        functools.partial(_proj_ln_kernel, eps=eps),
        grid=(Mp // tm,),
        out_shape=jax.ShapeDtypeStruct((Mp, N), jnp.bfloat16),
        in_specs=[
            pl.BlockSpec((tm, K), lambda i: (i, 0)),
            pl.BlockSpec((K, N), lambda i: (0, 0)),
            pl.BlockSpec((1, N), lambda i: (0, 0)),
            pl.BlockSpec((tm, N), lambda i: (i, 0)),
            pl.BlockSpec((1, N), lambda i: (0, 0)),
            pl.BlockSpec((1, N), lambda i: (0, 0)),
        ],
        out_specs=pl.BlockSpec((tm, N), lambda i: (i, 0)),
        compiler_params=pltpu.CompilerParams(
            dimension_semantics=("parallel",)),
    )(xp, w, b.reshape(1, N), rp, gamma.reshape(1, N), beta.reshape(1, N))
    return out[:M] if Mp != M else out


# ----------------------------------------------------------------------------
# Kernel 4: fused FFN (Linear->ReLU->Linear->ReLU) + residual + LayerNorm
#   out = LN(relu(relu(x @ w1 + b1) @ w2 + b2) + x)
#   Tiled over M ("parallel") and over the filter dim F ("arbitrary") with a
#   (tm, H) f32 accumulator: the (tm, F) intermediate never exists whole.
# ----------------------------------------------------------------------------
def _ffn_ln_kernel(x_ref, w1_ref, b1_ref, w2_ref, b2_ref, g_ref, beta_ref,
                   o_ref, acc_ref, *, eps):
    fi = pl.program_id(1)

    @pl.when(fi == 0)
    def _init():
        acc_ref[...] = jnp.zeros_like(acc_ref)

    x = x_ref[...]                                            # (tm, H) bf16
    h = jnp.dot(x, w1_ref[...], preferred_element_type=jnp.float32)
    h = jnp.maximum(h + b1_ref[...], 0.0).astype(jnp.bfloat16)  # (tm, tf)
    acc_ref[...] += jnp.dot(h, w2_ref[...],
                            preferred_element_type=jnp.float32)

    @pl.when(fi == pl.num_programs(1) - 1)
    def _fin():
        y = jnp.maximum(acc_ref[...] + b2_ref[...], 0.0)      # second ReLU
        y = y + x.astype(jnp.float32)                         # residual
        mean = jnp.mean(y, axis=-1, keepdims=True)
        var = jnp.mean(jnp.square(y - mean), axis=-1, keepdims=True)
        o_ref[...] = ((y - mean) * lax.rsqrt(var + eps) * g_ref[...]
                      + beta_ref[...]).astype(o_ref.dtype)


def ffn_ln(x, w1, b1, w2, b2, gamma, beta, eps=1e-5):
    M, H = x.shape
    F = w1.shape[1]
    tm = _pick_tile(M, (256, 128))
    tf = _pick_tile(F, (512, 256, 128))
    xp = _pad_to(x, 0, tm)
    w1p = _pad_to(w1, 1, tf)
    b1p = _pad_to(b1.reshape(1, F), 1, tf)
    w2p = _pad_to(w2, 0, tf)
    Mp = xp.shape[0]
    Fp = w1p.shape[1]
    out = pl.pallas_call(
        functools.partial(_ffn_ln_kernel, eps=eps),
        grid=(Mp // tm, Fp // tf),
        out_shape=jax.ShapeDtypeStruct((Mp, H), jnp.bfloat16),
        in_specs=[
            pl.BlockSpec((tm, H), lambda i, f: (i, 0)),
            pl.BlockSpec((H, tf), lambda i, f: (0, f)),
            pl.BlockSpec((1, tf), lambda i, f: (0, f)),
            pl.BlockSpec((tf, H), lambda i, f: (f, 0)),
            pl.BlockSpec((1, H), lambda i, f: (0, 0)),
            pl.BlockSpec((1, H), lambda i, f: (0, 0)),
            pl.BlockSpec((1, H), lambda i, f: (0, 0)),
        ],
        out_specs=pl.BlockSpec((tm, H), lambda i, f: (i, 0)),
        scratch_shapes=[pltpu.VMEM((tm, H), jnp.float32)],
        compiler_params=pltpu.CompilerParams(
            dimension_semantics=("parallel", "arbitrary")),
    )(xp, w1p, b1p, w2p, b2.reshape(1, H),
      gamma.reshape(1, H), beta.reshape(1, H))
    return out[:M] if Mp != M else out


# ----------------------------------------------------------------------------
# Model parameters + plain-JAX glue around the kernels
# ----------------------------------------------------------------------------
def generate_pos_encoder(in_channels, max_len=500):
    pos = jnp.arange(max_len, dtype=jnp.float32)[:, None]
    i = jnp.arange(in_channels, dtype=jnp.float32)[None, :]
    angle_rates = 1.0 / jnp.power(10000.0, 2.0 * jnp.floor(i / 2.0) / in_channels)
    pe = pos * angle_rates
    pe = pe.at[:, 0::2].set(jnp.sin(pe[:, 0::2]))
    pe = pe.at[:, 1::2].set(jnp.cos(pe[:, 1::2]))
    return pe  # (max_len, in_channels)


def _init_linear(key, fan_in, fan_out):
    kw, kb = jax.random.split(key)
    w = jax.random.normal(kw, (fan_in, fan_out), jnp.float32) * 0.05
    b = jax.random.normal(kb, (fan_out,), jnp.float32) * 0.01
    return w, b


def _init_self_attn(key, hidden, scale):
    ks = jax.random.split(key, 4)
    wq, bq = _init_linear(ks[0], hidden, hidden)
    wk, bk = _init_linear(ks[1], hidden, hidden)
    wv, bv = _init_linear(ks[2], hidden, hidden)
    wo, bo = _init_linear(ks[3], hidden, hidden)
    # fold 1/temperature into the Q projection
    wq = wq * scale
    bq = bq * scale
    return dict(
        wqkv=jnp.concatenate([wq, wk, wv], axis=1).astype(jnp.bfloat16),
        bqkv=jnp.concatenate([bq, bk, bv], axis=0),
        wo=wo.astype(jnp.bfloat16), bo=bo)


def _init_cross_attn(key, hidden, src_dim, scale):
    ks = jax.random.split(key, 4)
    wq, bq = _init_linear(ks[0], hidden, hidden)
    wk, bk = _init_linear(ks[1], src_dim, hidden)
    wv, bv = _init_linear(ks[2], src_dim, hidden)
    wo, bo = _init_linear(ks[3], hidden, hidden)
    wq = wq * scale
    bq = bq * scale
    return dict(
        wq=wq.astype(jnp.bfloat16), bq=bq,
        wkv=jnp.concatenate([wk, wv], axis=1).astype(jnp.bfloat16),
        bkv=jnp.concatenate([bk, bv], axis=0),
        wo=wo.astype(jnp.bfloat16), bo=bo)


def init_params(key, num_classes, src_dim, hidden_dim, filter_dim, layer_num):
    keys = jax.random.split(key, 2 + layer_num)
    scale = 1.0 / math.sqrt(hidden_dim)   # temperature = sqrt(head_num*head_dim)
    params = {
        "embedding": jax.random.normal(
            keys[0], (num_classes + 1, hidden_dim), jnp.float32) * 0.05,
        "pos_enc": generate_pos_encoder(hidden_dim),
        "num_classes": num_classes,
        "layers": [],
    }
    # classifier, output lanes padded once to a multiple of 128 (sliced in fwd)
    gw, gb = _init_linear(keys[1], hidden_dim, num_classes)
    n_pad = _round_up(num_classes, 128)
    params["gen_w"] = jnp.pad(gw, ((0, 0), (0, n_pad - num_classes))
                              ).astype(jnp.bfloat16)
    params["gen_b"] = jnp.pad(gb, (0, n_pad - num_classes))
    for l in range(layer_num):
        lk = jax.random.split(keys[2 + l], 4)
        w1, b1 = _init_linear(lk[2], hidden_dim, filter_dim)
        w2, b2 = _init_linear(lk[3], filter_dim, hidden_dim)
        layer = dict(
            self_attn=_init_self_attn(lk[0], hidden_dim, scale),
            cross_attn=_init_cross_attn(lk[1], hidden_dim, src_dim, scale),
            ff_w1=w1.astype(jnp.bfloat16), ff_b1=b1,
            ff_w2=w2.astype(jnp.bfloat16), ff_b2=b2,
            ln1_g=jnp.ones((hidden_dim,), jnp.float32),
            ln1_b=jnp.zeros((hidden_dim,), jnp.float32),
            ln2_g=jnp.ones((hidden_dim,), jnp.float32),
            ln2_b=jnp.zeros((hidden_dim,), jnp.float32),
            ln3_g=jnp.ones((hidden_dim,), jnp.float32),
            ln3_b=jnp.zeros((hidden_dim,), jnp.float32),
        )
        params["layers"].append(layer)
    return params


def decoder_layer(p, tgt, src, key_bias, head_num):
    B, T, H = tgt.shape
    S = src.shape[1]
    x2d = tgt.reshape(B * T, H)                              # bf16

    # --- self attention (fused QKV projection, causal + pad mask in-kernel) --
    sa = p["self_attn"]
    qkv = matmul(x2d, sa["wqkv"], sa["bqkv"])                # (B*T, 3H) bf16
    q = qkv[:, :H].reshape(B, T, H)
    k = qkv[:, H:2 * H].reshape(B, T, H)
    v = qkv[:, 2 * H:].reshape(B, T, H)
    att = mha_attention(q, k, v, key_bias, head_num=head_num, causal=True)
    out = proj_ln(att.reshape(B * T, H), sa["wo"], sa["bo"], x2d,
                  p["ln1_g"], p["ln1_b"])                    # (B*T, H) bf16

    # --- cross attention (query = original tgt, as in the reference; no mask)
    ca = p["cross_attn"]
    qc = matmul(x2d, ca["wq"], ca["bq"]).reshape(B, T, H)
    kv = matmul(src.reshape(B * S, -1), ca["wkv"], ca["bkv"])  # (B*S, 2H) bf16
    kc = kv[:, :H].reshape(B, S, H)
    vc = kv[:, H:].reshape(B, S, H)
    att2 = mha_attention(qc, kc, vc, None, head_num=head_num, causal=False)
    out = proj_ln(att2.reshape(B * T, H), ca["wo"], ca["bo"], out,
                  p["ln2_g"], p["ln2_b"])                    # (B*T, H) bf16

    # --- fused feedforward + residual + LayerNorm (F tiled inside kernel) ---
    out = ffn_ln(out, p["ff_w1"], p["ff_b1"], p["ff_w2"], p["ff_b2"],
                 p["ln3_g"], p["ln3_b"])
    return out.reshape(B, T, H)


def transformer_decoder_forward(params, src, text, head_num, pad_id):
    """Teacher-forcing (is_train=True) forward.  Returns (B, T, num_classes) f32."""
    B, T = text.shape
    H = params["embedding"].shape[1]
    # text embedding * sqrt(H) + positional encoding   (dropout == identity)
    tgt = params["embedding"][text] * math.sqrt(H)
    tgt = (tgt + params["pos_enc"][None, :T, :]).astype(jnp.bfloat16)
    src_bf = src.astype(jnp.bfloat16)
    # pad mask as a tiny additive key bias (B, 1, T); causal mask is in-kernel
    pad = (text == pad_id)
    pad = pad.at[:, 0].set(False)
    key_bias = jnp.where(pad, -1e30, 0.0)[:, None, :].astype(jnp.float32)
    for layer_params in params["layers"]:
        tgt = decoder_layer(layer_params, tgt, src_bf, key_bias, head_num)
    out = matmul(tgt.reshape(B * T, H), params["gen_w"], params["gen_b"],
                 out_dtype=jnp.float32)
    out = out[:, :params["num_classes"]]
    return out.reshape(B, T, -1)


# ----------------------------------------------------------------------------
# Demo
# ----------------------------------------------------------------------------
if __name__ == "__main__":
    # small shapes
    num_classes = 10
    src_dim = 32
    hidden_dim = 32
    filter_dim = 64
    head_num = 4
    layer_num = 1
    pad_id = 0

    B, T, S_src = 2, 8, 16

    key = jax.random.PRNGKey(0)
    k_param, k_src, k_text = jax.random.split(key, 3)

    params = init_params(k_param, num_classes, src_dim, hidden_dim,
                         filter_dim, layer_num)

    src = jax.random.normal(k_src, (B, S_src, src_dim), jnp.float32)
    text = jax.random.randint(k_text, (B, T), 0, num_classes + 1, jnp.int32)

    out = transformer_decoder_forward(params, src, text, head_num, pad_id)
    out = jax.block_until_ready(out)

    assert out.shape == (B, T, num_classes), out.shape
    assert jnp.all(jnp.isfinite(out)), "non-finite output"
    print("KERNEL_OK")
</pallas_src>

<mosaic_0001>
module attributes {stable_mosaic.version = 11 : i64} {
  func.func @_matmul_kernel(%arg0: i32, %arg1: i32, %arg2: i32, %arg3: memref<16x32xbf16, #tpu.memory_space<vmem>>, %arg4: memref<32x96xbf16, #tpu.memory_space<vmem>>, %arg5: memref<1x96xf32, #tpu.memory_space<vmem>>, %arg6: memref<16x96xbf16, #tpu.memory_space<vmem>>, %arg7: memref<16x96xf32, #tpu.memory_space<vmem>>) attributes {dimension_semantics = [#tpu.dimension_semantics<parallel>, #tpu.dimension_semantics<parallel>, #tpu.dimension_semantics<arbitrary>], iteration_bounds = array<i64: 1, 1, 1>, scalar_prefetch = 0 : i64, scratch_operands = 1 : i64, tpu.core_type = #tpu.core_type<tc>, window_params = [{transform_indices = @transform_0, window_bounds = array<i64: 16, 32>}, {transform_indices = @transform_1, window_bounds = array<i64: 32, 96>}, {transform_indices = @transform_2, window_bounds = array<i64: 1, 96>}, {transform_indices = @transform_3, window_bounds = array<i64: 16, 96>}]} {
    %c0_i32 = arith.constant 0 : i32
    %0 = arith.cmpi eq, %arg2, %c0_i32 : i32
    %1 = arith.extui %0 : i1 to i32
    %c0_i32_0 = arith.constant 0 : i32
    %2 = arith.cmpi ne, %1, %c0_i32_0 : i32
    scf.if %2 {
      %cst_10 = arith.constant 0.000000e+00 : f32
      %12 = vector.broadcast %cst_10 : f32 to vector<16x96xf32>
      %c0_11 = arith.constant 0 : index
      %c0_12 = arith.constant 0 : index
      %13 = vector.load %arg7[%c0_11, %c0_12] : memref<16x96xf32, #tpu.memory_space<vmem>>, vector<16x96xf32>
      tpu.vector_store %arg7[%c0_11, %c0_12], %12 {strides = array<i32>} : memref<16x96xf32, #tpu.memory_space<vmem>>, vector<16x96xf32>,
    } else {
    }
    %c0 = arith.constant 0 : index
    %c0_1 = arith.constant 0 : index
    %3 = vector.load %arg7[%c0, %c0_1] : memref<16x96xf32, #tpu.memory_space<vmem>>, vector<16x96xf32>
    %c0_2 = arith.constant 0 : index
    %c0_3 = arith.constant 0 : index
    %4 = vector.load %arg3[%c0_2, %c0_3] : memref<16x32xbf16, #tpu.memory_space<vmem>>, vector<16x32xbf16>
    %c0_4 = arith.constant 0 : index
    %c0_5 = arith.constant 0 : index
    %5 = vector.load %arg4[%c0_4, %c0_5] : memref<32x96xbf16, #tpu.memory_space<vmem>>, vector<32x96xbf16>
    %cst = arith.constant dense<0.000000e+00> : vector<16x96xf32>
    %6 = tpu.matmul %4, %5, %cst {dimension_numbers = #tpu.dot_dimension_numbers<[1], [0], [0], [1], [0, 0, 1, 1], [], []>} : vector<16x32xbf16>, vector<32x96xbf16>, vector<16x96xf32> -> vector<16x96xf32>
    %7 = arith.addf %3, %6 : vector<16x96xf32>
    %c0_6 = arith.constant 0 : index
    %c0_7 = arith.constant 0 : index
    %8 = vector.load %arg7[%c0_6, %c0_7] : memref<16x96xf32, #tpu.memory_space<vmem>>, vector<16x96xf32>
    tpu.vector_store %arg7[%c0_6, %c0_7], %7 {strides = array<i32>} : memref<16x96xf32, #tpu.memory_space<vmem>>, vector<16x96xf32>,
    %c0_i32_8 = arith.constant 0 : i32
    %9 = arith.cmpi eq, %arg2, %c0_i32_8 : i32
    %10 = arith.extui %9 : i1 to i32
    %c0_i32_9 = arith.constant 0 : i32
    %11 = arith.cmpi ne, %10, %c0_i32_9 : i32
    scf.if %11 {
      %c0_10 = arith.constant 0 : index
      %c0_11 = arith.constant 0 : index
      %12 = vector.load %arg7[%c0_10, %c0_11] : memref<16x96xf32, #tpu.memory_space<vmem>>, vector<16x96xf32>
      %c0_12 = arith.constant 0 : index
      %c0_13 = arith.constant 0 : index
      %13 = vector.load %arg5[%c0_12, %c0_13] : memref<1x96xf32, #tpu.memory_space<vmem>>, vector<1x96xf32>
      %14 = vector.broadcast %13 : vector<1x96xf32> to vector<16x96xf32>
      %15 = arith.addf %12, %14 : vector<16x96xf32>
      %16 = arith.truncf %15 : vector<16x96xf32> to vector<16x96xbf16>
      %c0_14 = arith.constant 0 : index
      %c0_15 = arith.constant 0 : index
      %17 = vector.load %arg6[%c0_14, %c0_15] : memref<16x96xbf16, #tpu.memory_space<vmem>>, vector<16x96xbf16>
      tpu.vector_store %arg6[%c0_14, %c0_15], %16 {strides = array<i32>} : memref<16x96xbf16, #tpu.memory_space<vmem>>, vector<16x96xbf16>,
    } else {
    }
    return
  }
  func.func @transform_0(%arg0: i32, %arg1: i32, %arg2: i32) -> (i32, i32) {
    %c0_i32 = arith.constant 0 : i32
    return %arg0, %arg2 : i32, i32
  }
  func.func @transform_1(%arg0: i32, %arg1: i32, %arg2: i32) -> (i32, i32) {
    %c0_i32 = arith.constant 0 : i32
    return %arg2, %arg1 : i32, i32
  }
  func.func @transform_2(%arg0: i32, %arg1: i32, %arg2: i32) -> (i32, i32) {
    %c0_i32 = arith.constant 0 : i32
    %c0_i32_0 = arith.constant 0 : i32
    return %c0_i32, %arg1 : i32, i32
  }
  func.func @transform_3(%arg0: i32, %arg1: i32, %arg2: i32) -> (i32, i32) {
    %c0_i32 = arith.constant 0 : i32
    return %arg0, %arg1 : i32, i32
  }
}

</mosaic_0001>

<llo_original>
// kernel: tpu_custom_call.1
$region0: #{tpu_custom_call.1}
  #allocation0 [shape = 'u32[]', space=smem, size = 0x4, offset = 0x4, fixed_abs, tag = 'smem constant byte address 0x4 - core index']
  #allocation1 [shape = 'u32[144,128]{1,0:T(1,128)}', space=vmem, size = 0x12000, scoped, tag = 'internal scratch']
  #allocation2 [shape = 'f32[16,96]{1,0:T(8,128)}', space=vmem, size = 0x2000, scoped, tag = 'scratch operand']
  %s0 = inlined_call_operand.hbm [shape: bf16[16,32], index: 0, kind: input, shape index: {}]
  %s1 = inlined_call_operand.hbm [shape: bf16[32,96], index: 1, kind: input, shape index: {}]
  %s2 = inlined_call_operand.vmem [shape: f32[1,96], index: 2, kind: input, shape index: {}]
  %s3 = inlined_call_operand.hbm [shape: bf16[16,96], index: 3, kind: output, shape index: {}]
  %s4 = sld [smem:[#allocation0]]
  $region38: #{tpu_custom_call.1} parent=0
    _
  %s6 = ssub.s32 1, %s4
  %s7 = scalar_select 0, %s6, %s4
  $region1: #{tpu_custom_call.1} parent=0
    #allocation3 [shape = 'u8[4096]{0}', space=vmem, size = 0x1000, scoped, tag = 'input window, operand 0, single buffered']
    #allocation4 [shape = 's32[1]{0}', space=sflag, size = 0x4, scoped, tag = 'scoped memory for tpu_custom_call.1']
    #allocation5 [shape = 's32[1]{0}', space=sflag, size = 0x4, scoped, tag = 'scoped memory for tpu_custom_call.1']
    #allocation6 [shape = 'u8[8192]{0}', space=vmem, size = 0x2000, scoped, tag = 'input window, operand 1, single buffered']
    #allocation7 [shape = 's32[1]{0}', space=sflag, size = 0x4, scoped, tag = 'scoped memory for tpu_custom_call.1']
    #allocation8 [shape = 'u8[4096]{0}', space=vmem, size = 0x1000, scoped, tag = 'output window, operand 0, single buffered']
    %8 = vsyncpa [#allocation4], 0
    %9 = vsyncpa [#allocation7], 0
    %10 = vsyncpa [#allocation5], 0
    // Predicated region
    $region2: #{tpu_custom_call.1} parent=1 // pred_check
      _
    $region3: #{tpu_custom_call.1} parent=1 // pred_check_branch
      %12 = sbr.rel (0) target = $region5
    $region4: #{tpu_custom_call.1} parent=1 // pred_region
      %s14 = ssub.s32 128, 128
      %15 = vsyncadd [#allocation4], %s14
      %s16 = sshll.u32 [#allocation3], 4
      %s17 = int_to_ptr.vmem [resolvable:$true] %s16
      %22 = dma.hbm_to_vmem [thread:$0]  %s0, 128, %s17, [#allocation4], 64, 64, 4
    $region5: #{tpu_custom_call.1} parent=1 // pred_fallthru
      _
    // Predicated region
    $region6: #{tpu_custom_call.1} parent=1 // pred_check
      _
    $region7: #{tpu_custom_call.1} parent=1 // pred_check_branch
      %24 = sbr.rel (0) target = $region9
    $region8: #{tpu_custom_call.1} parent=1 // pred_region
      %s26 = ssub.s32 256, 256
      %27 = vsyncadd [#allocation7], %s26
      %s28 = sshll.u32 [#allocation6], 4
      %s29 = int_to_ptr.vmem [resolvable:$true] %s28
      %34 = dma.hbm_to_vmem [thread:$0]  %s1, 256, %s29, [#allocation7], 64, 64, 4
    $region9: #{tpu_custom_call.1} parent=1 // pred_fallthru
      _
    // Predicated region
    $region10: #{tpu_custom_call.1} parent=1 // pred_check
      _
    $region11: #{tpu_custom_call.1} parent=1 // pred_check_branch
      %36 = sbr.rel (0) target = $region13
    $region12: #{tpu_custom_call.1} parent=1 // pred_region
      _
    $region13: #{tpu_custom_call.1} parent=1 // pred_fallthru
      _
    // Predicated region
    $region14: #{tpu_custom_call.1} parent=1 // pred_check
      _
    $region15: #{tpu_custom_call.1} parent=1 // pred_check_branch
      %38 = sbr.rel (0) target = $region17
    $region16: #{tpu_custom_call.1} parent=1 // pred_region
      %39 = dma.done [#allocation4], 128
    $region17: #{tpu_custom_call.1} parent=1 // pred_fallthru
      _
    // Predicated region
    $region18: #{tpu_custom_call.1} parent=1 // pred_check
      _
    $region19: #{tpu_custom_call.1} parent=1 // pred_check_branch
      %41 = sbr.rel (0) target = $region21
    $region20: #{tpu_custom_call.1} parent=1 // pred_region
      %42 = dma.done [#allocation7], 256
    $region21: #{tpu_custom_call.1} parent=1 // pred_fallthru
      _
    %p44 = scmp.eq.s32.totalorder 0, 0
    // Predicated region
    $region22: #{tpu_custom_call.1} parent=1 // pred_check
      %p45 = pneg %p44
    $region23: #{tpu_custom_call.1} parent=1 // pred_check_branch
      %47 = sbr.rel (%p45) target = $region25
    $region24: #{tpu_custom_call.1} parent=1 // pred_region
      %vm48 = vcmask 785408
      %49 = vst.msk [vmem:[#allocation2] sm:$0xff] %vm48, 0.0
      %50 = vst.msk [vmem:[#allocation2 + $0x8] sm:$0xff] %vm48, 0.0
    $region25: #{tpu_custom_call.1} parent=1 // pred_fallthru
      _
    %v51 = vld [vmem:[#allocation2] sm:$0xff]
    %v52 = vld [vmem:[#allocation2 + $0x8] sm:$0xff]
    %v53 = vld [vmem:[#allocation3] sm:$0xf]
    %v54 = vld [vmem:[#allocation3 + $0x4] sm:$0xf]
    %v55 = vld [vmem:[#allocation6] sm:$0xf]
    %v56 = vld [vmem:[#allocation6 + $0x4] sm:$0xf]
    %v57 = vld [vmem:[#allocation6 + $0x8] sm:$0xf]
    %v58 = vld [vmem:[#allocation6 + $0xc] sm:$0xf]
    %v61 = vunpack.c.l.b16 %v53
    %v62 = vunpack.c.l.b16 %v54
    %v63 = vpack.c.b16 %v62, %v61
    %v68 = vunpack.c.l.b16 %v55
    %v69 = vunpack.c.l.b16 %v56
    %v70 = vunpack.c.l.b16 %v57
    %v71 = vunpack.c.l.b16 %v58
    %v72 = vpack.c.b16 %v69, %v68
    %v73 = vpack.c.b16 %v71, %v70
    %vm76 = vcmask 261120
    %v78 = vsel %vm76, %v63, 0
    %80 = vmatprep.subr.bf16.mxu0 0
    %81 = vmatpush1.bf16.msra.mxu0 0
    %82 = vmatprep.subr.bf16.mxu0 0
    %83 = vmatpush1.bf16.msra.mxu0 0
    %84 = vmatprep.subr.bf16.mxu0 0
    %85 = vmatpush1.bf16.msra.mxu0 0
    %86 = vmatprep.subr.bf16.mxu0 0
    %87 = vmatpush1.bf16.msra.mxu0 0
    %88 = vmatprep.subr.bf16.mxu0 0
    %89 = vmatpush1.bf16.msra.mxu0 0
    %90 = vmatprep.subr.bf16.mxu0 0
    %91 = vmatpush1.bf16.msra.mxu0 0
    %92 = vmatprep.subr.bf16.mxu0 0
    %93 = vmatpush1.bf16.msra.mxu0 %v73
    %94 = vmatprep.subr.bf16.mxu0 0
    %95 = vmatpush1.bf16.msra.mxu0 %v72
    %96 = vmatprep.subr.bf16.mxu0 0
    %97 = vmatpush2.bf16.msra.mxu0 0
    %98 = vmatprep.subr.bf16.mxu0 0
    %99 = vmatpush2.bf16.msra.mxu0 0
    %100 = vmatprep.subr.bf16.mxu0 0
    %101 = vmatpush2.bf16.msra.mxu0 0
    %102 = vmatprep.subr.bf16.mxu0 0
    %103 = vmatpush2.bf16.msra.mxu0 0
    %104 = vmatprep.subr.bf16.mxu0 0
    %105 = vmatpush2.bf16.msra.mxu0 0
    %106 = vmatprep.subr.bf16.mxu0 0
    %107 = vmatpush2.bf16.msra.mxu0 0
    %108 = vmatprep.subr.bf16.mxu0 0
    %109 = vmatpush2.bf16.msra.mxu0 0
    %110 = vmatprep.subr.bf16.mxu0 0
    %111 = vmatpush2.bf16.msra.mxu0 0
    %112 = vmatprep.mubr.bf16.mxu0 0
    %113 = vmatmul.mubr.bf16.gmra.mxu0 %v78
    %v114 = vpop.f32.mrf.mxu0
    %v115 = vadd.f32 0.0, %v114
    %v116 = vpop.f32.mrf.mxu0
    %v117 = vpop.f32.mrf.mxu0
    %v118 = vadd.f32 0.0, %v117
    %v119 = vpop.f32.mrf.mxu0
    %120 = vdwg.mxu0
    %v121 = vadd.f32 %v51, %v115
    %v122 = vadd.f32 %v52, %v118
    %vm123 = vcmask 785408
    %124 = vst.msk [vmem:[#allocation2] sm:$0xff] %vm123, %v121
    %125 = vst.msk [vmem:[#allocation2 + $0x8] sm:$0xff] %vm123, %v122
    // Predicated region
    $region26: #{tpu_custom_call.1} parent=1 // pred_check
      %p126 = pneg %p44
    $region27: #{tpu_custom_call.1} parent=1 // pred_check_branch
      %128 = sbr.rel (%p126) target = $region29
    $region28: #{tpu_custom_call.1} parent=1 // pred_region
      %v129 = vld [vmem:[#allocation2] sm:$0xff]
      %v130 = vld [vmem:[#allocation2 + $0x8] sm:$0xff]
      %v131 = vld [vmem:[%s2] sm:$0x1]
      %v133 = vlaneseq
      %v134 = vshrl.u32 %v133, 7
      %v135 = vsub.s32 0, %v134
      %v136 = vrot.slane %v131, %v135
      %v138 = vadd.f32 %v129, %v136
      %v139 = vadd.f32 %v130, %v136
      %v140 = vpack.c.bf16 %v139, %v138
      %v142 = vunpack.c.l.b16 %v140
      %v143 = vunpack.c.h.b16 %v140
      %v144 = vpack.c.b16 %v142, %v142
      %v145 = vpack.c.b16 %v143, %v143
      %vm148 = vcmask 781312
      %149 = vst.msk [vmem:[#allocation8] sm:$0xf] %vm148, %v144
      %150 = vst.msk [vmem:[#allocation8 + $0x4] sm:$0xf] %vm148, %v145
    $region29: #{tpu_custom_call.1} parent=1 // pred_fallthru
      _
    // Predicated region
    $region30: #{tpu_custom_call.1} parent=1 // pred_check
      _
    $region31: #{tpu_custom_call.1} parent=1 // pred_check_branch
      %152 = sbr.rel (0) target = $region33
    $region32: #{tpu_custom_call.1} parent=1 // pred_region
      %s154 = ssub.s32 128, 128
      %155 = vsyncadd [#allocation5], %s154
      %s156 = sshll.u32 [#allocation8], 4
      %s157 = int_to_ptr.vmem [resolvable:$true] %s156
      %162 = dma.vmem_to_hbm [thread:$0]  %s157, 128, %s3, [#allocation5], 64, 64, 4
    $region33: #{tpu_custom_call.1} parent=1 // pred_fallthru
      _
    // Predicated region
    $region34: #{tpu_custom_call.1} parent=1 // pred_check
      _
    $region35: #{tpu_custom_call.1} parent=1 // pred_check_branch
      %164 = sbr.rel (0) target = $region37
    $region36: #{tpu_custom_call.1} parent=1 // pred_region
      %165 = dma.done [#allocation5], 128
    $region37: #{tpu_custom_call.1} parent=1 // pred_fallthru
      _
    %166 = vsyncpa [#allocation4], 1
    %167 = vsyncpa [#allocation7], 1
    %168 = vsyncpa [#allocation5], 1

</llo_original>
